<compile_context>
chip_gen: v5e
topology: v5e:2x2
jax: 0.10.0
libtpu: 0.0.40
codegen_flags: <defaults>
</compile_context>

<pallas_src>
import functools

import jax
import jax.numpy as jnp
from jax import lax
from jax.experimental import pallas as pl
from jax.experimental.pallas import tpu as pltpu


def _vmem_capacity_bytes():
    """Physical VMEM per core; falls back to the smallest (v7x-sized) value."""
    try:
        cap = getattr(pltpu.get_tpu_info(), "vmem_capacity_bytes", None)
        if cap:
            return int(cap)
    except Exception:
        pass
    return 64 * 1024 * 1024


def _choose_tb(bc, plane_in_bytes, plane_f32_bytes, vmem_budget_bytes,
               total_in_bytes):
    """Planes per grid step.

    Sized from the live VMEM footprint (2x-buffered input block plus ~5 f32
    intermediates: upcast x, dh, dw, squares), prefers a divisor of bc within
    2x of the cap so the ragged-plane mask compiles away, and keeps >= 8 grid
    steps on larger inputs so both v7x TensorCores get work and the
    auto-pipeline has steps to overlap.
    """
    per_plane_live = 2 * plane_in_bytes + 5 * plane_f32_bytes
    cap = max(1, vmem_budget_bytes // per_plane_live)
    if total_in_bytes > (4 * 1024 * 1024):
        min_blocks = min(bc, 8)
        cap = min(cap, -(-bc // min_blocks))
    cap = int(max(1, min(cap, bc)))
    for t in range(cap, max(cap // 2, 1) - 1, -1):  # largest divisor within 2x
        if bc % t == 0:
            return t
    return cap  # no good divisor: ragged last block, masked in-kernel


def _slab_reduce(sq, *, drop_row=None, drop_col=None):
    """(TB, H, W) squared diffs -> (8, 128) partial slab using VPU-only adds.

    Requires H % 8 == 0 and W % 128 == 0 so every reshape / 128-wide slice is
    layout-free (no cross-lane/sublane XLU reduce, no relayout copies).
    drop_row / drop_col zero the circular-roll wrap row/column at the already
    reduced (H, W) / (8, W) stage, so the masking cost is ~1/TB op per element.
    """
    _, h, w = sq.shape
    s = jnp.sum(sq, axis=0)                               # (H, W): vadds only
    if drop_row is not None:
        row = lax.broadcasted_iota(jnp.int32, (h, w), 0)
        s = jnp.where(row == drop_row, 0.0, s)
    s = jnp.sum(s.reshape(h // 8, 8, w), axis=0)          # (8, W): layout-free
    if drop_col is not None:
        col = lax.broadcasted_iota(jnp.int32, (8, w), 1)
        s = jnp.where(col == drop_col, 0.0, s)
    out = s[:, 0:128]
    for g in range(1, w // 128):                          # fold lane groups
        out = out + s[:, g * 128:(g + 1) * 128]
    return out                                            # (8, 128)


def _tv_kernel(x_ref, out_ref, *, total_planes, aligned):
    """x_ref: (TB, H, W) planes; out_ref: (2, 8, 128) partial slabs (h, w)."""
    tb, h, w = x_ref.shape
    x = x_ref[...].astype(jnp.float32)   # in-kernel upcast: bf16 streams half bytes

    # Ragged last block: zero padded planes.  tb is normally a divisor of
    # total_planes so this branch (and its per-element select) compiles away.
    if total_planes % tb != 0:
        plane = lax.broadcasted_iota(jnp.int32, (tb, 1, 1), 0)
        valid = (pl.program_id(0) * tb + plane) < total_planes
        x = jnp.where(valid, x, 0.0)

    if aligned:
        # Fast path: circular diffs via roll (XLU), VPU-only slab reductions.
        # Row 0 / col 0 of the rolled diff hold the wrap term and are dropped
        # inside _slab_reduce.
        dh = pltpu.roll(x, shift=1, axis=1) - x
        dw = pltpu.roll(x, shift=1, axis=2) - x
        out_ref[0] = _slab_reduce(dh * dh, drop_row=0)
        out_ref[1] = _slab_reduce(dw * dw, drop_col=0)
    else:
        # Small / odd spatial dims (e.g. the 16x16 test shape): plain slicing,
        # scalar sums, tiny (8,128) pack.  Perf is irrelevant for these shapes.
        dh = x[:, 1:, :] - x[:, :-1, :]
        dw = x[:, :, 1:] - x[:, :, :-1]
        h_sq = jnp.sum(dh * dh)
        w_sq = jnp.sum(dw * dw)
        row = lax.broadcasted_iota(jnp.int32, (8, 128), 0)
        col = lax.broadcasted_iota(jnp.int32, (8, 128), 1)
        first = (row == 0) & (col == 0)
        out_ref[0] = jnp.where(first, h_sq, 0.0)
        out_ref[1] = jnp.where(first, w_sq, 0.0)


def tv_loss(x):
    """x: (B, C, H, W) float array -> scalar TV loss (float32)."""
    B, C, H, W = x.shape
    bc = B * C
    x_flat = x.reshape(bc, H, W)   # keep input dtype; upcast happens in-kernel

    plane_in_bytes = H * W * x_flat.dtype.itemsize
    plane_f32_bytes = H * W * 4
    total_in_bytes = bc * plane_in_bytes

    # 64 MiB scoped VMEM on 128 MiB parts (v5e/v6e), 32 MiB on v7x (64 MiB phys).
    vmem_limit = min(64 * 1024 * 1024,
                     max(32 * 1024 * 1024, _vmem_capacity_bytes() // 2))
    vmem_budget = (vmem_limit * 3) // 4   # headroom for output buffers etc.

    tb = _choose_tb(bc, plane_in_bytes, plane_f32_bytes, vmem_budget,
                    total_in_bytes)
    num_blocks = -(-bc // tb)
    aligned = (H % 8 == 0) and (W % 128 == 0)

    partials = pl.pallas_call(
        functools.partial(_tv_kernel, total_planes=bc, aligned=aligned),
        out_shape=jax.ShapeDtypeStruct((2 * num_blocks, 8, 128), jnp.float32),
        grid_spec=pltpu.PrefetchScalarGridSpec(
            num_scalar_prefetch=0,
            grid=(num_blocks,),
            in_specs=[pl.BlockSpec((tb, H, W), lambda i: (i, 0, 0))],
            out_specs=pl.BlockSpec((2, 8, 128), lambda i: (i, 0, 0)),
        ),
        compiler_params=pltpu.CompilerParams(
            # Independent per-block partials -> grid axis is megacore-shardable.
            dimension_semantics=("parallel",),
            vmem_limit_bytes=vmem_limit,
        ),
    )(x_flat)

    p = partials.reshape(num_blocks, 2, 8, 128)
    h_tv = jnp.sum(p[:, 0])
    w_tv = jnp.sum(p[:, 1])
    count_h = jnp.float32(C * (H - 1) * W)   # _tensor_size(x[:, :, 1:, :])
    count_w = jnp.float32(C * H * (W - 1))   # _tensor_size(x[:, :, :, 1:])
    return h_tv / count_h + w_tv / count_w


def tv_loss_ref(x):
    x = x.astype(jnp.float32)
    B, C, H, W = x.shape
    h_tv = jnp.sum((x[:, :, 1:, :] - x[:, :, :-1, :]) ** 2)
    w_tv = jnp.sum((x[:, :, :, 1:] - x[:, :, :, :-1]) ** 2)
    return h_tv / (C * (H - 1) * W) + w_tv / (C * H * (W - 1))


if __name__ == "__main__":
    key = jax.random.PRNGKey(0)

    # Small shape implied by the module (exercises the generic slicing path).
    x_small = jax.random.normal(key, (2, 4, 16, 16), dtype=jnp.float32)
    out = jax.block_until_ready(tv_loss(x_small))
    ref = jax.block_until_ready(tv_loss_ref(x_small))
    assert jnp.allclose(out, ref, rtol=1e-5, atol=1e-5), (out, ref)

    # (8,128)-aligned shape (exercises the roll + VPU-slab fast path).
    x_aligned = jax.random.normal(key, (2, 4, 16, 128), dtype=jnp.float32)
    out_a = jax.block_until_ready(tv_loss(x_aligned))
    ref_a = jax.block_until_ready(tv_loss_ref(x_aligned))
    assert jnp.allclose(out_a, ref_a, rtol=1e-5, atol=1e-5), (out_a, ref_a)

    print("KERNEL_OK")
</pallas_src>

<mosaic_0001>
module attributes {stable_mosaic.version = 11 : i64} {
  func.func @_tv_kernel(%arg0: i32, %arg1: memref<8x16x16xf32, #tpu.memory_space<vmem>>, %arg2: memref<2x8x128xf32, #tpu.memory_space<vmem>>) attributes {dimension_semantics = [#tpu.dimension_semantics<parallel>], iteration_bounds = array<i64: 1>, scalar_prefetch = 0 : i64, scratch_operands = 0 : i64, tpu.core_type = #tpu.core_type<tc>, window_params = [{transform_indices = @transform_0, window_bounds = array<i64: 8, 16, 16>}, {transform_indices = @transform_1, window_bounds = array<i64: 2, 8, 128>}]} {
    %c0 = arith.constant 0 : index
    %c0_0 = arith.constant 0 : index
    %c0_1 = arith.constant 0 : index
    %0 = vector.load %arg1[%c0, %c0_0, %c0_1] : memref<8x16x16xf32, #tpu.memory_space<vmem>>, vector<8x16x16xf32>
    %1 = vector.extract_strided_slice %0 {offsets = [0, 1, 0], sizes = [8, 15, 16], strides = [1, 1, 1]} : vector<8x16x16xf32> to vector<8x15x16xf32>
    %2 = vector.extract_strided_slice %0 {offsets = [0, 0, 0], sizes = [8, 15, 16], strides = [1, 1, 1]} : vector<8x16x16xf32> to vector<8x15x16xf32>
    %3 = arith.subf %1, %2 : vector<8x15x16xf32>
    %4 = vector.extract_strided_slice %0 {offsets = [0, 0, 1], sizes = [8, 16, 15], strides = [1, 1, 1]} : vector<8x16x16xf32> to vector<8x16x15xf32>
    %5 = vector.extract_strided_slice %0 {offsets = [0, 0, 0], sizes = [8, 16, 15], strides = [1, 1, 1]} : vector<8x16x16xf32> to vector<8x16x15xf32>
    %6 = arith.subf %4, %5 : vector<8x16x15xf32>
    %7 = arith.mulf %3, %3 : vector<8x15x16xf32>
    %8 = vector.shape_cast %7 : vector<8x15x16xf32> to vector<1x8x15x16xf32>
    %cst = arith.constant dense<0.000000e+00> : vector<1xf32>
    %9 = vector.multi_reduction <add>, %8, %cst [1, 2, 3] : vector<1x8x15x16xf32> to vector<1xf32>
    %10 = vector.shape_cast %9 : vector<1xf32> to vector<1x1x1x1xf32>
    %11 = vector.extract %10[0, 0, 0, 0] : f32 from vector<1x1x1x1xf32>
    %12 = arith.mulf %6, %6 : vector<8x16x15xf32>
    %13 = vector.shape_cast %12 : vector<8x16x15xf32> to vector<1x8x16x15xf32>
    %cst_2 = arith.constant dense<0.000000e+00> : vector<1xf32>
    %14 = vector.multi_reduction <add>, %13, %cst_2 [1, 2, 3] : vector<1x8x16x15xf32> to vector<1xf32>
    %15 = vector.shape_cast %14 : vector<1xf32> to vector<1x1x1x1xf32>
    %16 = vector.extract %15[0, 0, 0, 0] : f32 from vector<1x1x1x1xf32>
    %17 = tpu.iota {dimensions = array<i32: 0>} : vector<8x128xi32>
    %18 = tpu.iota {dimensions = array<i32: 1>} : vector<8x128xi32>
    %c0_i32 = arith.constant 0 : i32
    %19 = vector.broadcast %c0_i32 : i32 to vector<8x128xi32>
    %20 = arith.cmpi eq, %17, %19 : vector<8x128xi32>
    %c0_i32_3 = arith.constant 0 : i32
    %21 = vector.broadcast %c0_i32_3 : i32 to vector<8x128xi32>
    %22 = arith.cmpi eq, %18, %21 : vector<8x128xi32>
    %23 = arith.andi %20, %22 : vector<8x128xi1>
    %cst_4 = arith.constant 0.000000e+00 : f32
    %24 = vector.broadcast %11 : f32 to vector<8x128xf32>
    %25 = vector.broadcast %cst_4 : f32 to vector<8x128xf32>
    %26 = arith.select %23, %24, %25 : vector<8x128xi1>, vector<8x128xf32>
    %c0_5 = arith.constant 0 : index
    %c0_6 = arith.constant 0 : index
    %c0_7 = arith.constant 0 : index
    %27 = vector.load %arg2[%c0_5, %c0_6, %c0_7] : memref<2x8x128xf32, #tpu.memory_space<vmem>>, vector<1x8x128xf32>
    %28 = vector.shape_cast %27 : vector<1x8x128xf32> to vector<8x128xf32>
    %29 = vector.shape_cast %26 : vector<8x128xf32> to vector<1x8x128xf32>
    tpu.vector_store %arg2[%c0_5, %c0_6, %c0_7], %29 {strides = array<i32>} : memref<2x8x128xf32, #tpu.memory_space<vmem>>, vector<1x8x128xf32>,
    %cst_8 = arith.constant 0.000000e+00 : f32
    %30 = vector.broadcast %16 : f32 to vector<8x128xf32>
    %31 = vector.broadcast %cst_8 : f32 to vector<8x128xf32>
    %32 = arith.select %23, %30, %31 : vector<8x128xi1>, vector<8x128xf32>
    %c1 = arith.constant 1 : index
    %c0_9 = arith.constant 0 : index
    %c0_10 = arith.constant 0 : index
    %33 = vector.load %arg2[%c1, %c0_9, %c0_10] : memref<2x8x128xf32, #tpu.memory_space<vmem>>, vector<1x8x128xf32>
    %34 = vector.shape_cast %33 : vector<1x8x128xf32> to vector<8x128xf32>
    %35 = vector.shape_cast %32 : vector<8x128xf32> to vector<1x8x128xf32>
    tpu.vector_store %arg2[%c1, %c0_9, %c0_10], %35 {strides = array<i32>} : memref<2x8x128xf32, #tpu.memory_space<vmem>>, vector<1x8x128xf32>,
    return
  }
  func.func @transform_0(%arg0: i32) -> (i32, i32, i32) {
    %c0_i32 = arith.constant 0 : i32
    %c0_i32_0 = arith.constant 0 : i32
    %c0_i32_1 = arith.constant 0 : i32
    return %arg0, %c0_i32, %c0_i32_0 : i32, i32, i32
  }
  func.func @transform_1(%arg0: i32) -> (i32, i32, i32) {
    %c0_i32 = arith.constant 0 : i32
    %c0_i32_0 = arith.constant 0 : i32
    %c0_i32_1 = arith.constant 0 : i32
    return %arg0, %c0_i32, %c0_i32_0 : i32, i32, i32
  }
}

</mosaic_0001>

<llo_original>
// kernel: tpu_custom_call.1
$region0: #{tpu_custom_call.1}
  #allocation0 [shape = 'u32[]', space=smem, size = 0x4, offset = 0x4, fixed_abs, tag = 'smem constant byte address 0x4 - core index']
  #allocation1 [shape = 'u32[72,128]{1,0:T(1,128)}', space=vmem, size = 0x9000, scoped, tag = 'internal scratch']
  %s0 = inlined_call_operand.hbm [shape: f32[8,16,16], index: 0, kind: input, shape index: {}]
  %s1 = inlined_call_operand.hbm [shape: f32[2,8,128], index: 1, kind: output, shape index: {}]
  %s2 = sld [smem:[#allocation0]]
  $region18: #{tpu_custom_call.1} parent=0
    _
  %s4 = ssub.s32 1, %s2
  %s5 = scalar_select 0, %s4, %s2
  $region1: #{tpu_custom_call.1} parent=0
    #allocation2 [shape = 'u8[65536]{0}', space=vmem, size = 0x10000, scoped, tag = 'input window, operand 0, single buffered']
    #allocation3 [shape = 's32[1]{0}', space=sflag, size = 0x4, scoped, tag = 'scoped memory for tpu_custom_call.1']
    #allocation4 [shape = 's32[1]{0}', space=sflag, size = 0x4, scoped, tag = 'scoped memory for tpu_custom_call.1']
    #allocation5 [shape = 'u8[8192]{0}', space=vmem, size = 0x2000, scoped, tag = 'output window, operand 0, single buffered']
    %6 = vsyncpa [#allocation3], 0
    %7 = vsyncpa [#allocation4], 0
    // Predicated region
    $region2: #{tpu_custom_call.1} parent=1 // pred_check
      _
    $region3: #{tpu_custom_call.1} parent=1 // pred_check_branch
      %9 = sbr.rel (0) target = $region5
    $region4: #{tpu_custom_call.1} parent=1 // pred_region
      %11 = vsyncadd [#allocation3], 0
      %s12 = sshll.u32 %s0, 4
      %s13 = int_to_ptr.hbm [resolvable:$true] %s12
      %s14 = sshll.u32 [#allocation2], 4
      %s15 = int_to_ptr.vmem [resolvable:$true] %s14
      %20 = dma.hbm_to_vmem [thread:$0]  %s13, 2048, %s15, [#allocation3], 128, 128, 8
    $region5: #{tpu_custom_call.1} parent=1 // pred_fallthru
      _
    // Predicated region
    $region6: #{tpu_custom_call.1} parent=1 // pred_check
      _
    $region7: #{tpu_custom_call.1} parent=1 // pred_check_branch
      %22 = sbr.rel (0) target = $region9
    $region8: #{tpu_custom_call.1} parent=1 // pred_region
      %24 = dma.done [#allocation3], 2048
    $region9: #{tpu_custom_call.1} parent=1 // pred_fallthru
      _
    %v25 = vld [vmem:[#allocation2] sm:$0xff]
    %v26 = vld [vmem:[#allocation2 + $0x8] sm:$0xff]
    %v27 = vld [vmem:[#allocation2 + $0x10] sm:$0xff]
    %v28 = vld [vmem:[#allocation2 + $0x18] sm:$0xff]
    %v29 = vld [vmem:[#allocation2 + $0x20] sm:$0xff]
    %v30 = vld [vmem:[#allocation2 + $0x28] sm:$0xff]
    %v31 = vld [vmem:[#allocation2 + $0x30] sm:$0xff]
    %v32 = vld [vmem:[#allocation2 + $0x38] sm:$0xff]
    %v33 = vld [vmem:[#allocation2 + $0x40] sm:$0xff]
    %v34 = vld [vmem:[#allocation2 + $0x48] sm:$0xff]
    %v35 = vld [vmem:[#allocation2 + $0x50] sm:$0xff]
    %v36 = vld [vmem:[#allocation2 + $0x58] sm:$0xff]
    %v37 = vld [vmem:[#allocation2 + $0x60] sm:$0xff]
    %v38 = vld [vmem:[#allocation2 + $0x68] sm:$0xff]
    %v39 = vld [vmem:[#allocation2 + $0x70] sm:$0xff]
    %v40 = vld [vmem:[#allocation2 + $0x78] sm:$0xff]
    %vm57 = vcmask 1040384
    %v58 = vrot.slane %v25, 7
    %v59 = vrot.slane %v26, 7
    %v60 = vsel %vm57, %v58, %v59
    %v61 = vrot.slane %v27, 7
    %v62 = vrot.slane %v28, 7
    %v63 = vsel %vm57, %v61, %v62
    %v64 = vrot.slane %v29, 7
    %v65 = vrot.slane %v30, 7
    %v66 = vsel %vm57, %v64, %v65
    %v67 = vrot.slane %v31, 7
    %v68 = vrot.slane %v32, 7
    %v69 = vsel %vm57, %v67, %v68
    %v70 = vrot.slane %v33, 7
    %v71 = vrot.slane %v34, 7
    %v72 = vsel %vm57, %v70, %v71
    %v73 = vrot.slane %v35, 7
    %v74 = vrot.slane %v36, 7
    %v75 = vsel %vm57, %v73, %v74
    %v76 = vrot.slane %v37, 7
    %v77 = vrot.slane %v38, 7
    %v78 = vsel %vm57, %v76, %v77
    %v79 = vrot.slane %v39, 7
    %v80 = vrot.slane %v40, 7
    %v81 = vsel %vm57, %v79, %v80
    %v98 = vsub.f32 %v25, %v58
    %v99 = vsub.f32 %v26, %v60
    %v100 = vsub.f32 %v27, %v61
    %v101 = vsub.f32 %v28, %v63
    %v102 = vsub.f32 %v29, %v64
    %v103 = vsub.f32 %v30, %v66
    %v104 = vsub.f32 %v31, %v67
    %v105 = vsub.f32 %v32, %v69
    %v106 = vsub.f32 %v33, %v70
    %v107 = vsub.f32 %v34, %v72
    %v108 = vsub.f32 %v35, %v73
    %v109 = vsub.f32 %v36, %v75
    %v110 = vsub.f32 %v37, %v76
    %v111 = vsub.f32 %v38, %v78
    %v112 = vsub.f32 %v39, %v79
    %v113 = vsub.f32 %v40, %v81
    %114 = vrot.lane.b32.xlu0 %v25, 1
    %v115 = vpop.permute.xlu0 %114
    %116 = vrot.lane.b32.xlu0 %v26, 1
    %v117 = vpop.permute.xlu0 %116
    %118 = vrot.lane.b32.xlu0 %v27, 1
    %v119 = vpop.permute.xlu0 %118
    %120 = vrot.lane.b32.xlu0 %v28, 1
    %v121 = vpop.permute.xlu0 %120
    %122 = vrot.lane.b32.xlu0 %v29, 1
    %v123 = vpop.permute.xlu0 %122
    %124 = vrot.lane.b32.xlu0 %v30, 1
    %v125 = vpop.permute.xlu0 %124
    %126 = vrot.lane.b32.xlu0 %v31, 1
    %v127 = vpop.permute.xlu0 %126
    %128 = vrot.lane.b32.xlu0 %v32, 1
    %v129 = vpop.permute.xlu0 %128
    %130 = vrot.lane.b32.xlu0 %v33, 1
    %v131 = vpop.permute.xlu0 %130
    %132 = vrot.lane.b32.xlu0 %v34, 1
    %v133 = vpop.permute.xlu0 %132
    %134 = vrot.lane.b32.xlu0 %v35, 1
    %v135 = vpop.permute.xlu0 %134
    %136 = vrot.lane.b32.xlu0 %v36, 1
    %v137 = vpop.permute.xlu0 %136
    %138 = vrot.lane.b32.xlu0 %v37, 1
    %v139 = vpop.permute.xlu0 %138
    %140 = vrot.lane.b32.xlu0 %v38, 1
    %v141 = vpop.permute.xlu0 %140
    %142 = vrot.lane.b32.xlu0 %v39, 1
    %v143 = vpop.permute.xlu0 %142
    %144 = vrot.lane.b32.xlu0 %v40, 1
    %v145 = vpop.permute.xlu0 %144
    %v162 = vsub.f32 %v25, %v115
    %v163 = vsub.f32 %v26, %v117
    %v164 = vsub.f32 %v27, %v119
    %v165 = vsub.f32 %v28, %v121
    %v166 = vsub.f32 %v29, %v123
    %v167 = vsub.f32 %v30, %v125
    %v168 = vsub.f32 %v31, %v127
    %v169 = vsub.f32 %v32, %v129
    %v170 = vsub.f32 %v33, %v131
    %v171 = vsub.f32 %v34, %v133
    %v172 = vsub.f32 %v35, %v135
    %v173 = vsub.f32 %v36, %v137
    %v174 = vsub.f32 %v37, %v139
    %v175 = vsub.f32 %v38, %v141
    %v176 = vsub.f32 %v39, %v143
    %v177 = vsub.f32 %v40, %v145
    %v178 = vmul.f32 %v98, %v98
    %v179 = vmul.f32 %v99, %v99
    %v180 = vmul.f32 %v100, %v100
    %v181 = vmul.f32 %v101, %v101
    %v182 = vmul.f32 %v102, %v102
    %v183 = vmul.f32 %v103, %v103
    %v184 = vmul.f32 %v104, %v104
    %v185 = vmul.f32 %v105, %v105
    %v186 = vmul.f32 %v106, %v106
    %v187 = vmul.f32 %v107, %v107
    %v188 = vmul.f32 %v108, %v108
    %v189 = vmul.f32 %v109, %v109
    %v190 = vmul.f32 %v110, %v110
    %v191 = vmul.f32 %v111, %v111
    %v192 = vmul.f32 %v112, %v112
    %v193 = vmul.f32 %v113, %v113
    %vm210 = vcmask 1046528
    %v211 = vrot.slane %v178, 1
    %v212 = vrot.slane %v179, 1
    %v213 = vsel %vm210, %v211, %v212
    %v214 = vrot.slane %v180, 1
    %v215 = vrot.slane %v181, 1
    %v216 = vsel %vm210, %v214, %v215
    %v217 = vrot.slane %v182, 1
    %v218 = vrot.slane %v183, 1
    %v219 = vsel %vm210, %v217, %v218
    %v220 = vrot.slane %v184, 1
    %v221 = vrot.slane %v185, 1
    %v222 = vsel %vm210, %v220, %v221
    %v223 = vrot.slane %v186, 1
    %v224 = vrot.slane %v187, 1
    %v225 = vsel %vm210, %v223, %v224
    %v226 = vrot.slane %v188, 1
    %v227 = vrot.slane %v189, 1
    %v228 = vsel %vm210, %v226, %v227
    %v229 = vrot.slane %v190, 1
    %v230 = vrot.slane %v191, 1
    %v231 = vsel %vm210, %v229, %v230
    %v232 = vrot.slane %v192, 1
    %v233 = vrot.slane %v193, 1
    %v234 = vsel %vm210, %v232, %v233
    %vm251 = vcmask 130048
    %v252 = vsel %vm251, %v213, 0.0
    %vm253 = vcmask 129024
    %v254 = vsel %vm253, %v212, 0.0
    %v255 = vadd.f32 %v252, %v254
    %v256 = vsel %vm251, %v216, 0.0
    %v257 = vadd.f32 %v255, %v256
    %v258 = vsel %vm253, %v215, 0.0
    %v259 = vadd.f32 %v257, %v258
    %v260 = vsel %vm251, %v219, 0.0
    %v261 = vadd.f32 %v259, %v260
    %v262 = vsel %vm253, %v218, 0.0
    %v263 = vadd.f32 %v261, %v262
    %v264 = vsel %vm251, %v222, 0.0
    %v265 = vadd.f32 %v263, %v264
    %v266 = vsel %vm253, %v221, 0.0
    %v267 = vadd.f32 %v265, %v266
    %v268 = vsel %vm251, %v225, 0.0
    %v269 = vadd.f32 %v267, %v268
    %v270 = vsel %vm253, %v224, 0.0
    %v271 = vadd.f32 %v269, %v270
    %v272 = vsel %vm251, %v228, 0.0
    %v273 = vadd.f32 %v271, %v272
    %v274 = vsel %vm253, %v227, 0.0
    %v275 = vadd.f32 %v273, %v274
    %v276 = vsel %vm251, %v231, 0.0
    %v277 = vadd.f32 %v275, %v276
    %v278 = vsel %vm253, %v230, 0.0
    %v279 = vadd.f32 %v277, %v278
    %v280 = vsel %vm251, %v234, 0.0
    %v281 = vadd.f32 %v279, %v280
    %v282 = vsel %vm253, %v233, 0.0
    %v283 = vadd.f32 %v281, %v282
    %284 = vadd.xlane.f32.xlu0 %v283
    %v285 = vpop.xlane.xlu0 %284
    %v286 = vrot.slane %v285, 4
    %v287 = vadd.f32 %v285, %v286
    %v288 = vrot.slane %v287, 2
    %v289 = vadd.f32 %v287, %v288
    %v290 = vrot.slane %v289, 1
    %v291 = vadd.f32 %v289, %v290
    %s292 = vtos %v291
    %v293 = vmul.f32 %v162, %v162
    %v294 = vmul.f32 %v163, %v163
    %v295 = vmul.f32 %v164, %v164
    %v296 = vmul.f32 %v165, %v165
    %v297 = vmul.f32 %v166, %v166
    %v298 = vmul.f32 %v167, %v167
    %v299 = vmul.f32 %v168, %v168
    %v300 = vmul.f32 %v169, %v169
    %v301 = vmul.f32 %v170, %v170
    %v302 = vmul.f32 %v171, %v171
    %v303 = vmul.f32 %v172, %v172
    %v304 = vmul.f32 %v173, %v173
    %v305 = vmul.f32 %v174, %v174
    %v306 = vmul.f32 %v175, %v175
    %v307 = vmul.f32 %v176, %v176
    %v308 = vmul.f32 %v177, %v177
    %325 = vrot.lane.b32.xlu0 %v293, 127
    %v326 = vpop.permute.xlu0 %325
    %327 = vrot.lane.b32.xlu0 %v294, 127
    %v328 = vpop.permute.xlu0 %327
    %329 = vrot.lane.b32.xlu0 %v295, 127
    %v330 = vpop.permute.xlu0 %329
    %331 = vrot.lane.b32.xlu0 %v296, 127
    %v332 = vpop.permute.xlu0 %331
    %333 = vrot.lane.b32.xlu0 %v297, 127
    %v334 = vpop.permute.xlu0 %333
    %335 = vrot.lane.b32.xlu0 %v298, 127
    %v336 = vpop.permute.xlu0 %335
    %337 = vrot.lane.b32.xlu0 %v299, 127
    %v338 = vpop.permute.xlu0 %337
    %339 = vrot.lane.b32.xlu0 %v300, 127
    %v340 = vpop.permute.xlu0 %339
    %341 = vrot.lane.b32.xlu0 %v301, 127
    %v342 = vpop.permute.xlu0 %341
    %343 = vrot.lane.b32.xlu0 %v302, 127
    %v344 = vpop.permute.xlu0 %343
    %345 = vrot.lane.b32.xlu0 %v303, 127
    %v346 = vpop.permute.xlu0 %345
    %347 = vrot.lane.b32.xlu0 %v304, 127
    %v348 = vpop.permute.xlu0 %347
    %349 = vrot.lane.b32.xlu0 %v305, 127
    %v350 = vpop.permute.xlu0 %349
    %351 = vrot.lane.b32.xlu0 %v306, 127
    %v352 = vpop.permute.xlu0 %351
    %353 = vrot.lane.b32.xlu0 %v307, 127
    %v354 = vpop.permute.xlu0 %353
    %355 = vrot.lane.b32.xlu0 %v308, 127
    %v356 = vpop.permute.xlu0 %355
    %vm373 = vcmask 121856
    %v374 = vsel %vm373, %v326, 0.0
    %v375 = vsel %vm373, %v328, 0.0
    %v376 = vadd.f32 %v374, %v375
    %v377 = vsel %vm373, %v330, 0.0
    %v378 = vadd.f32 %v376, %v377
    %v379 = vsel %vm373, %v332, 0.0
    %v380 = vadd.f32 %v378, %v379
    %v381 = vsel %vm373, %v334, 0.0
    %v382 = vadd.f32 %v380, %v381
    %v383 = vsel %vm373, %v336, 0.0
    %v384 = vadd.f32 %v382, %v383
    %v385 = vsel %vm373, %v338, 0.0
    %v386 = vadd.f32 %v384, %v385
    %v387 = vsel %vm373, %v340, 0.0
    %v388 = vadd.f32 %v386, %v387
    %v389 = vsel %vm373, %v342, 0.0
    %v390 = vadd.f32 %v388, %v389
    %v391 = vsel %vm373, %v344, 0.0
    %v392 = vadd.f32 %v390, %v391
    %v393 = vsel %vm373, %v346, 0.0
    %v394 = vadd.f32 %v392, %v393
    %v395 = vsel %vm373, %v348, 0.0
    %v396 = vadd.f32 %v394, %v395
    %v397 = vsel %vm373, %v350, 0.0
    %v398 = vadd.f32 %v396, %v397
    %v399 = vsel %vm373, %v352, 0.0
    %v400 = vadd.f32 %v398, %v399
    %v401 = vsel %vm373, %v354, 0.0
    %v402 = vadd.f32 %v400, %v401
    %v403 = vsel %vm373, %v356, 0.0
    %v404 = vadd.f32 %v402, %v403
    %405 = vadd.xlane.f32.xlu0 %v404
    %v406 = vpop.xlane.xlu0 %405
    %v407 = vrot.slane %v406, 4
    %v408 = vadd.f32 %v406, %v407
    %v409 = vrot.slane %v408, 2
    %v410 = vadd.f32 %v408, %v409
    %v411 = vrot.slane %v410, 1
    %v412 = vadd.f32 %v410, %v411
    %s413 = vtos %v412
    %v414 = vlaneseq
    %v415 = vshrl.u32 %v414, 7
    %v416 = vlaneseq
    %v417 = vand.u32 %v416, 127
    %vm418 = vcmp.eq.s32.totalorder %v415, 0
    %vm419 = vcmp.eq.s32.totalorder %v417, 0
    %vm420 = vmand %vm418, %vm419
    %v421 = vstv %s292
    %v422 = vsel %vm420, %v421, 0.0
    %423 = vst [vmem:[#allocation5] sm:$0xff] %v422
    %v424 = vstv %s413
    %v425 = vsel %vm420, %v424, 0.0
    %s426 = scalar_lea.vmem [#allocation5], 8
    %427 = vst [vmem:[%s426] sm:$0xff] %v425
    // Predicated region
    $region10: #{tpu_custom_call.1} parent=1 // pred_check
      _
    $region11: #{tpu_custom_call.1} parent=1 // pred_check_branch
      %429 = sbr.rel (0) target = $region13
    $region12: #{tpu_custom_call.1} parent=1 // pred_region
      %431 = vsyncadd [#allocation4], 0
      %s432 = sshll.u32 [#allocation5], 4
      %s433 = int_to_ptr.vmem [resolvable:$true] %s432
      %s434 = sshll.u32 %s1, 4
      %s435 = int_to_ptr.hbm [resolvable:$true] %s434
      %440 = dma.vmem_to_hbm [thread:$0]  %s433, 256, %s435, [#allocation4], 128, 128, 8
    $region13: #{tpu_custom_call.1} parent=1 // pred_fallthru
      _
    // Predicated region
    $region14: #{tpu_custom_call.1} parent=1 // pred_check
      _
    $region15: #{tpu_custom_call.1} parent=1 // pred_check_branch
      %442 = sbr.rel (0) target = $region17
    $region16: #{tpu_custom_call.1} parent=1 // pred_region
      %444 = dma.done [#allocation4], 256
    $region17: #{tpu_custom_call.1} parent=1 // pred_fallthru
      _
    %445 = vsyncpa [#allocation3], 1
    %446 = vsyncpa [#allocation4], 1

</llo_original>
